<compile_context>
chip_gen: v7x
topology: tpu7x:2x2x1
jax: 0.10.0
libtpu: 0.0.40
codegen_flags: <defaults>
</compile_context>

<pallas_src>
import math
import functools

import jax
import jax.numpy as jnp
from jax import lax
from jax.experimental import pallas as pl
from jax.experimental.pallas import tpu as pltpu


def _egp_kernel(x_ref, wmain_ref, bmain_ref, wcb_ref, bcb_ref,
                cos_ref, sin_ref, mrow_ref, mcol_ref, out_ref,
                qrot_ref, krot_ref, rbias_ref, cbias_ref,
                *, head_size, heads, tq):
    D = head_size
    half = D // 2
    qi = pl.program_id(1)

    # ---- once per batch element: fused projection, RoPE, per-head biases ----
    @pl.when(qi == 0)
    def _():
        x = x_ref[0]                                                  # (S, H)
        # Single MXU call: [q_even | q_odd | k_even | k_odd | row_bias(heads)]
        proj = jnp.dot(x, wmain_ref[...],
                       preferred_element_type=jnp.float32) + bmain_ref[...]
        c = cos_ref[...]                                              # (S, D//2)
        s = sin_ref[...]
        qe = proj[:, 0:half]
        qo = proj[:, half:D]
        ke = proj[:, D:D + half]
        ko = proj[:, D + half:2 * D]
        scale = jnp.float32(1.0 / (D ** 0.5))
        # Rotated q/k stored as [even | odd]; 1/sqrt(D) folded into q.
        qrot_ref[...] = jnp.concatenate([qe * c - qo * s, qo * c + qe * s],
                                        axis=-1) * scale              # (S, D)
        krot_ref[...] = jnp.concatenate([ke * c - ko * s, ko * c + ke * s],
                                        axis=-1)                      # (S, D)
        # Row bias (acts on m) came out of the fused matmul (0.5 already folded).
        rbias_ref[...] = proj[:, 2 * D:2 * D + heads]                 # (S, heads)
        # Column bias (acts on n), computed straight from x in (heads, S) layout
        # so the per-tile loop only needs a cheap sublane-broadcast slice.
        cbias_ref[...] = lax.dot_general(
            wcb_ref[...], x, (((0,), (1,)), ((), ())),
            preferred_element_type=jnp.float32) + bcb_ref[...]        # (heads, S)

    # ---- per query tile ----
    q0 = pl.multiple_of(qi * tq, tq)
    qt = qrot_ref[pl.ds(q0, tq), :]                                   # (TQ, D)
    kr = krot_ref[...]                                                # (S, D)
    S = kr.shape[0]

    logits = lax.dot_general(qt, kr, (((1,), (1,)), ((), ())),
                             preferred_element_type=jnp.float32)      # (TQ, S)

    # Padding + tril masks, hoisted out of the head loop.
    mrow = mrow_ref[0, pl.ds(q0, tq), :]                              # (TQ, 1)
    mcol = mcol_ref[0]                                                # (1, S)
    valid = (mrow > 0) & (mcol > 0)                                   # (TQ, S)
    row_i = lax.broadcasted_iota(jnp.int32, (tq, S), 0) + q0
    col_i = lax.broadcasted_iota(jnp.int32, (tq, S), 1)
    tril = jnp.where(row_i > col_i, jnp.float32(1e12), jnp.float32(0.0))
    base = jnp.where(valid, logits, jnp.float32(-jnp.inf)) - tril     # (TQ, S)

    rb = rbias_ref[pl.ds(q0, tq), :]                                  # (TQ, heads)
    cb = cbias_ref[...]                                               # (heads, S)

    # heads is small -> static unroll; 2 VPU adds + 1 store per output element
    # (well under the HBM-writeback roofline that dominates this kernel).
    for h in range(heads):
        out_ref[0, h] = (base + rb[:, h:h + 1] + cb[h:h + 1, :]).astype(out_ref.dtype)


def _pick_tq(S, heads):
    """Largest query tile that divides S and keeps one output block <= ~8 MiB."""
    budget = 8 << 20
    cands = [t for t in (256, 128, 64, 32, 16, 8) if t < S and S % t == 0]
    for t in cands:
        if heads * t * S * 4 <= budget:
            return t
    return cands[-1] if cands else S


def efficient_global_pointer(x, Wp, bp, Wq, bq, mask, *, heads, head_size,
                             out_dtype=jnp.float32):
    """x: [B,S,H] f32; Wp: [H,2*hs]; bp: [2*hs]; Wq: [2*hs,2*heads]; bq: [2*heads];
    mask: [B,S] (1 = valid). Returns logits [B, heads, S, S]."""
    B, S, H = x.shape
    D = head_size
    half = D // 2
    TQ = _pick_tq(S, heads)
    nq = S // TQ

    # Permute p_dense output columns (and q_dense input rows accordingly) so the
    # kernel sees [q_even | q_odd | k_even | k_odd] -> RoPE needs no interleave.
    perm = jnp.concatenate([jnp.arange(0, D, 2), jnp.arange(1, D, 2),
                            jnp.arange(D, 2 * D, 2), jnp.arange(D + 1, 2 * D, 2)])
    Wp_k = Wp[:, perm]                                   # (H, 2D)
    bp_k = bp[perm]                                      # (2D,)
    Wq_k = Wq[perm, :]                                   # (2D, 2*heads)
    wq_even = Wq_k[:, 0::2]                              # (2D, heads) -> row bias
    wq_odd = Wq_k[:, 1::2]                               # (2D, heads) -> col bias

    # Fold q_dense through p_dense (with the /2) so the kernel does one fused
    # projection matmul plus one small matmul for the column bias.
    W_rb = 0.5 * (Wp_k @ wq_even)                        # (H, heads)
    b_rb = 0.5 * (bp_k @ wq_even + bq[0::2])             # (heads,)
    W_main = jnp.concatenate([Wp_k, W_rb], axis=1)       # (H, 2D + heads)
    b_main = jnp.concatenate([bp_k, b_rb])[None, :]      # (1, 2D + heads)
    W_cb = 0.5 * (Wp_k @ wq_odd)                         # (H, heads)
    b_cb = (0.5 * (bp_k @ wq_odd + bq[1::2]))[:, None]   # (heads, 1)

    # Sinusoid table (adjacent rank): cos/sin of shape (S, D//2).
    pos = jnp.arange(S, dtype=jnp.float32)[:, None]
    div = jnp.exp(jnp.arange(0, D, 2, dtype=jnp.float32) * (-math.log(10000.0) / D))
    cos = jnp.cos(pos * div).astype(jnp.float32)
    sin = jnp.sin(pos * div).astype(jnp.float32)

    # Only (B,S)-sized mask data crosses HBM; the pair mask is built in-kernel.
    mask_f = mask.astype(jnp.float32)
    mask_row = mask_f[:, :, None]                        # (B, S, 1)
    mask_col = mask_f[:, None, :]                        # (B, 1, S)

    kernel = functools.partial(_egp_kernel, head_size=D, heads=heads, tq=TQ)

    # TODO(synk): callers with S not a multiple of 128 can pad S for a fully
    # lane-dense output writeback (biggest remaining lever at large S).
    return pl.pallas_call(
        kernel,
        out_shape=jax.ShapeDtypeStruct((B, heads, S, S), out_dtype),
        grid=(B, nq),
        in_specs=[
            pl.BlockSpec((1, S, H), lambda b, q: (b, 0, 0)),          # x
            pl.BlockSpec((H, 2 * D + heads), lambda b, q: (0, 0)),    # fused W
            pl.BlockSpec((1, 2 * D + heads), lambda b, q: (0, 0)),    # fused b
            pl.BlockSpec((H, heads), lambda b, q: (0, 0)),            # W col-bias
            pl.BlockSpec((heads, 1), lambda b, q: (0, 0)),            # b col-bias
            pl.BlockSpec((S, half), lambda b, q: (0, 0)),             # cos
            pl.BlockSpec((S, half), lambda b, q: (0, 0)),             # sin
            pl.BlockSpec((1, S, 1), lambda b, q: (b, 0, 0)),          # mask rows
            pl.BlockSpec((1, 1, S), lambda b, q: (b, 0, 0)),          # mask cols
        ],
        out_specs=pl.BlockSpec((1, heads, TQ, S), lambda b, q: (b, 0, q, 0)),
        scratch_shapes=[
            pltpu.VMEM((S, D), jnp.float32),        # rotated q (scaled)
            pltpu.VMEM((S, D), jnp.float32),        # rotated k
            pltpu.VMEM((S, heads), jnp.float32),    # row bias
            pltpu.VMEM((heads, S), jnp.float32),    # col bias (transposed)
        ],
        compiler_params=pltpu.CompilerParams(
            dimension_semantics=("parallel", "arbitrary")),
    )(x, W_main, b_main, W_cb, b_cb, cos, sin, mask_row, mask_col)


def reference(x, Wp, bp, Wq, bq, mask, *, heads, head_size):
    """Pure-JAX transliteration of the PyTorch module (for verification)."""
    B, S, H = x.shape
    D = head_size
    seq_out = x @ Wp + bp                                     # (B,S,2D)
    qw, kw = seq_out[..., :D], seq_out[..., D:]
    pos = jnp.arange(S, dtype=jnp.float32)[:, None]
    div = jnp.exp(jnp.arange(0, D, 2, dtype=jnp.float32) * (-math.log(10000.0) / D))
    cos2 = jnp.repeat(jnp.cos(pos * div), 2, axis=-1)
    sin2 = jnp.repeat(jnp.sin(pos * div), 2, axis=-1)

    def rope(v):
        v2 = jnp.stack([-v[..., 1::2], v[..., ::2]], axis=-1).reshape(v.shape)
        return v * cos2 + v2 * sin2

    qw, kw = rope(qw), rope(kw)
    logits = jnp.einsum('bmd,bnd->bmn', qw, kw) / (D ** 0.5)
    bias_input = seq_out @ Wq + bq                             # (B,S,2*heads)
    bias = jnp.transpose(bias_input.reshape(B, S, heads, 2), (0, 2, 1, 3)) / 2.0
    logits = logits[:, None] + bias[..., :1] + jnp.swapaxes(bias[..., 1:], 2, 3)
    m = mask.astype(jnp.float32)
    logits = jnp.where(m[:, None, :, None] == 0, -jnp.inf, logits)
    logits = jnp.where(m[:, None, None, :] == 0, -jnp.inf, logits)
    tril = jnp.tril(jnp.ones((S, S), jnp.float32), -1) * 1e12
    return logits - tril


if __name__ == "__main__":
    B, S, H = 2, 16, 32
    heads, head_size = 4, 16

    key = jax.random.PRNGKey(0)
    k1, k2, k3, k4, k5 = jax.random.split(key, 5)
    x = jax.random.normal(k1, (B, S, H), dtype=jnp.float32)
    Wp = jax.random.normal(k2, (H, 2 * head_size), dtype=jnp.float32) * 0.05
    bp = jax.random.normal(k3, (2 * head_size,), dtype=jnp.float32) * 0.05
    Wq = jax.random.normal(k4, (2 * head_size, 2 * heads), dtype=jnp.float32) * 0.05
    bq = jax.random.normal(k5, (2 * heads,), dtype=jnp.float32) * 0.05
    mask = jnp.ones((B, S), dtype=jnp.float32)
    mask = mask.at[1, S - 5:].set(0.0)   # pad last 5 tokens of batch 1

    out = efficient_global_pointer(x, Wp, bp, Wq, bq, mask,
                                   heads=heads, head_size=head_size)
    out = jax.block_until_ready(out)

    ref = reference(x, Wp, bp, Wq, bq, mask, heads=heads, head_size=head_size)
    assert out.shape == (B, heads, S, S)
    assert bool(jnp.allclose(out, ref, rtol=1e-2, atol=1e-2)), "kernel != reference"
    print("KERNEL_OK")
</pallas_src>

<mosaic_0001>
module attributes {stable_mosaic.version = 11 : i64} {
  func.func @_egp_kernel(%arg0: i32, %arg1: i32, %arg2: memref<1x16x32xf32, #tpu.memory_space<vmem>>, %arg3: memref<32x36xf32, #tpu.memory_space<vmem>>, %arg4: memref<1x36xf32, #tpu.memory_space<vmem>>, %arg5: memref<32x4xf32, #tpu.memory_space<vmem>>, %arg6: memref<4x1xf32, #tpu.memory_space<vmem>>, %arg7: memref<16x8xf32, #tpu.memory_space<vmem>>, %arg8: memref<16x8xf32, #tpu.memory_space<vmem>>, %arg9: memref<1x16x1xf32, #tpu.memory_space<vmem>>, %arg10: memref<1x1x16xf32, #tpu.memory_space<vmem>>, %arg11: memref<1x4x8x16xf32, #tpu.memory_space<vmem>>, %arg12: memref<16x16xf32, #tpu.memory_space<vmem>>, %arg13: memref<16x16xf32, #tpu.memory_space<vmem>>, %arg14: memref<16x4xf32, #tpu.memory_space<vmem>>, %arg15: memref<4x16xf32, #tpu.memory_space<vmem>>) attributes {dimension_semantics = [#tpu.dimension_semantics<parallel>, #tpu.dimension_semantics<arbitrary>], iteration_bounds = array<i64: 2, 2>, scalar_prefetch = 0 : i64, scratch_operands = 4 : i64, tpu.core_type = #tpu.core_type<tc>, window_params = [{transform_indices = @transform_0, window_bounds = array<i64: 1, 16, 32>}, {pipeline_mode = #tpu.pipeline_mode<synchronous>, transform_indices = @transform_1, window_bounds = array<i64: 32, 36>}, {pipeline_mode = #tpu.pipeline_mode<synchronous>, transform_indices = @transform_2, window_bounds = array<i64: 1, 36>}, {pipeline_mode = #tpu.pipeline_mode<synchronous>, transform_indices = @transform_3, window_bounds = array<i64: 32, 4>}, {pipeline_mode = #tpu.pipeline_mode<synchronous>, transform_indices = @transform_4, window_bounds = array<i64: 4, 1>}, {pipeline_mode = #tpu.pipeline_mode<synchronous>, transform_indices = @transform_5, window_bounds = array<i64: 16, 8>}, {pipeline_mode = #tpu.pipeline_mode<synchronous>, transform_indices = @transform_6, window_bounds = array<i64: 16, 8>}, {transform_indices = @transform_7, window_bounds = array<i64: 1, 16, 1>}, {transform_indices = @transform_8, window_bounds = array<i64: 1, 1, 16>}, {transform_indices = @transform_9, window_bounds = array<i64: 1, 4, 8, 16>}]} {
    %c0_i32 = arith.constant 0 : i32
    %0 = arith.cmpi eq, %arg1, %c0_i32 : i32
    %1 = arith.extui %0 : i1 to i32
    %c0_i32_0 = arith.constant 0 : i32
    %2 = arith.cmpi ne, %1, %c0_i32_0 : i32
    scf.if %2 {
      %c0_29 = arith.constant 0 : index
      %c0_30 = arith.constant 0 : index
      %c0_31 = arith.constant 0 : index
      %71 = vector.load %arg2[%c0_29, %c0_30, %c0_31] : memref<1x16x32xf32, #tpu.memory_space<vmem>>, vector<1x16x32xf32>
      %72 = vector.shape_cast %71 : vector<1x16x32xf32> to vector<16x32xf32>
      %c0_32 = arith.constant 0 : index
      %c0_33 = arith.constant 0 : index
      %73 = vector.load %arg3[%c0_32, %c0_33] : memref<32x36xf32, #tpu.memory_space<vmem>>, vector<32x36xf32>
      %cst_34 = arith.constant dense<0.000000e+00> : vector<16x36xf32>
      %74 = tpu.matmul %72, %73, %cst_34 {dimension_numbers = #tpu.dot_dimension_numbers<[1], [0], [0], [1], [0, 0, 1, 1], [], []>} : vector<16x32xf32>, vector<32x36xf32>, vector<16x36xf32> -> vector<16x36xf32>
      %c0_35 = arith.constant 0 : index
      %c0_36 = arith.constant 0 : index
      %75 = vector.load %arg4[%c0_35, %c0_36] : memref<1x36xf32, #tpu.memory_space<vmem>>, vector<1x36xf32>
      %76 = vector.broadcast %75 : vector<1x36xf32> to vector<16x36xf32>
      %77 = arith.addf %74, %76 : vector<16x36xf32>
      %c0_37 = arith.constant 0 : index
      %c0_38 = arith.constant 0 : index
      %78 = vector.load %arg7[%c0_37, %c0_38] : memref<16x8xf32, #tpu.memory_space<vmem>>, vector<16x8xf32>
      %c0_39 = arith.constant 0 : index
      %c0_40 = arith.constant 0 : index
      %79 = vector.load %arg8[%c0_39, %c0_40] : memref<16x8xf32, #tpu.memory_space<vmem>>, vector<16x8xf32>
      %80 = vector.extract_strided_slice %77 {offsets = [0, 0], sizes = [16, 8], strides = [1, 1]} : vector<16x36xf32> to vector<16x8xf32>
      %81 = vector.extract_strided_slice %77 {offsets = [0, 8], sizes = [16, 8], strides = [1, 1]} : vector<16x36xf32> to vector<16x8xf32>
      %82 = vector.extract_strided_slice %77 {offsets = [0, 16], sizes = [16, 8], strides = [1, 1]} : vector<16x36xf32> to vector<16x8xf32>
      %83 = vector.extract_strided_slice %77 {offsets = [0, 24], sizes = [16, 8], strides = [1, 1]} : vector<16x36xf32> to vector<16x8xf32>
      %84 = arith.mulf %80, %78 : vector<16x8xf32>
      %85 = arith.mulf %81, %79 : vector<16x8xf32>
      %86 = arith.subf %84, %85 : vector<16x8xf32>
      %87 = arith.mulf %81, %78 : vector<16x8xf32>
      %88 = arith.mulf %80, %79 : vector<16x8xf32>
      %89 = arith.addf %87, %88 : vector<16x8xf32>
      %90 = tpu.concatenate %86, %89 in 1 : vector<16x8xf32>, vector<16x8xf32> -> vector<16x16xf32>
      %cst_41 = arith.constant 2.500000e-01 : f32
      %91 = vector.broadcast %cst_41 : f32 to vector<16x16xf32>
      %92 = arith.mulf %90, %91 : vector<16x16xf32>
      %c0_42 = arith.constant 0 : index
      %c0_43 = arith.constant 0 : index
      %93 = vector.load %arg12[%c0_42, %c0_43] : memref<16x16xf32, #tpu.memory_space<vmem>>, vector<16x16xf32>
      tpu.vector_store %arg12[%c0_42, %c0_43], %92 {strides = array<i32>} : memref<16x16xf32, #tpu.memory_space<vmem>>, vector<16x16xf32>,
      %94 = arith.mulf %82, %78 : vector<16x8xf32>
      %95 = arith.mulf %83, %79 : vector<16x8xf32>
      %96 = arith.subf %94, %95 : vector<16x8xf32>
      %97 = arith.mulf %83, %78 : vector<16x8xf32>
      %98 = arith.mulf %82, %79 : vector<16x8xf32>
      %99 = arith.addf %97, %98 : vector<16x8xf32>
      %100 = tpu.concatenate %96, %99 in 1 : vector<16x8xf32>, vector<16x8xf32> -> vector<16x16xf32>
      %c0_44 = arith.constant 0 : index
      %c0_45 = arith.constant 0 : index
      %101 = vector.load %arg13[%c0_44, %c0_45] : memref<16x16xf32, #tpu.memory_space<vmem>>, vector<16x16xf32>
      tpu.vector_store %arg13[%c0_44, %c0_45], %100 {strides = array<i32>} : memref<16x16xf32, #tpu.memory_space<vmem>>, vector<16x16xf32>,
      %102 = vector.extract_strided_slice %77 {offsets = [0, 32], sizes = [16, 4], strides = [1, 1]} : vector<16x36xf32> to vector<16x4xf32>
      %c0_46 = arith.constant 0 : index
      %c0_47 = arith.constant 0 : index
      %103 = vector.load %arg14[%c0_46, %c0_47] : memref<16x4xf32, #tpu.memory_space<vmem>>, vector<16x4xf32>
      tpu.vector_store %arg14[%c0_46, %c0_47], %102 {strides = array<i32>} : memref<16x4xf32, #tpu.memory_space<vmem>>, vector<16x4xf32>,
      %c0_48 = arith.constant 0 : index
      %c0_49 = arith.constant 0 : index
      %104 = vector.load %arg5[%c0_48, %c0_49] : memref<32x4xf32, #tpu.memory_space<vmem>>, vector<32x4xf32>
      %cst_50 = arith.constant dense<0.000000e+00> : vector<4x16xf32>
      %105 = tpu.matmul %104, %72, %cst_50 {dimension_numbers = #tpu.dot_dimension_numbers<[0], [1], [1], [0], [0, 1, 1, 0], [], []>} : vector<32x4xf32>, vector<16x32xf32>, vector<4x16xf32> -> vector<4x16xf32>
      %c0_51 = arith.constant 0 : index
      %c0_52 = arith.constant 0 : index
      %106 = vector.load %arg6[%c0_51, %c0_52] : memref<4x1xf32, #tpu.memory_space<vmem>>, vector<4x1xf32>
      %107 = vector.broadcast %106 : vector<4x1xf32> to vector<4x16xf32>
      %108 = arith.addf %105, %107 : vector<4x16xf32>
      %c0_53 = arith.constant 0 : index
      %c0_54 = arith.constant 0 : index
      %109 = vector.load %arg15[%c0_53, %c0_54] : memref<4x16xf32, #tpu.memory_space<vmem>>, vector<4x16xf32>
      tpu.vector_store %arg15[%c0_53, %c0_54], %108 {strides = array<i32>} : memref<4x16xf32, #tpu.memory_space<vmem>>, vector<4x16xf32>,
    } else {
    }
    %c8_i32 = arith.constant 8 : i32
    %3 = arith.muli %arg1, %c8_i32 : i32
    %4 = tpu.assume_multiple %3, 8 : i32
    %5 = arith.index_cast %4 : i32 to index
    %c0 = arith.constant 0 : index
    %6 = vector.load %arg12[%5, %c0] : memref<16x16xf32, #tpu.memory_space<vmem>>, vector<8x16xf32>
    %c0_1 = arith.constant 0 : index
    %c0_2 = arith.constant 0 : index
    %7 = vector.load %arg13[%c0_1, %c0_2] : memref<16x16xf32, #tpu.memory_space<vmem>>, vector<16x16xf32>
    %cst = arith.constant dense<0.000000e+00> : vector<8x16xf32>
    %8 = tpu.matmul %6, %7, %cst {dimension_numbers = #tpu.dot_dimension_numbers<[1], [1], [0], [0], [0, 0, 1, 0], [], []>} : vector<8x16xf32>, vector<16x16xf32>, vector<8x16xf32> -> vector<8x16xf32>
    %c0_3 = arith.constant 0 : index
    %9 = arith.index_cast %4 : i32 to index
    %c0_4 = arith.constant 0 : index
    %10 = vector.load %arg9[%c0_3, %9, %c0_4] : memref<1x16x1xf32, #tpu.memory_space<vmem>>, vector<1x8x1xf32>
    %11 = vector.shape_cast %10 : vector<1x8x1xf32> to vector<8x1xf32>
    %c0_5 = arith.constant 0 : index
    %c0_6 = arith.constant 0 : index
    %c0_7 = arith.constant 0 : index
    %12 = vector.load %arg10[%c0_5, %c0_6, %c0_7] : memref<1x1x16xf32, #tpu.memory_space<vmem>>, vector<1x1x16xf32>
    %13 = vector.shape_cast %12 : vector<1x1x16xf32> to vector<1x16xf32>
    %cst_8 = arith.constant 0.000000e+00 : f32
    %14 = vector.broadcast %cst_8 : f32 to vector<8x1xf32>
    %15 = arith.cmpf ogt, %11, %14 : vector<8x1xf32>
    %cst_9 = arith.constant 0.000000e+00 : f32
    %16 = vector.broadcast %cst_9 : f32 to vector<1x16xf32>
    %17 = arith.cmpf ogt, %13, %16 : vector<1x16xf32>
    %18 = vector.broadcast %15 : vector<8x1xi1> to vector<8x16xi1>
    %19 = vector.broadcast %17 : vector<1x16xi1> to vector<8x16xi1>
    %20 = arith.andi %18, %19 : vector<8x16xi1>
    %21 = tpu.iota {dimensions = array<i32: 0>} : vector<8x16xi32>
    %22 = vector.broadcast %4 : i32 to vector<8x16xi32>
    %23 = arith.addi %21, %22 : vector<8x16xi32>
    %24 = tpu.iota {dimensions = array<i32: 1>} : vector<8x16xi32>
    %25 = arith.cmpi sgt, %23, %24 : vector<8x16xi32>
    %cst_10 = arith.constant 9.99999995E+11 : f32
    %cst_11 = arith.constant 0.000000e+00 : f32
    %26 = vector.broadcast %cst_10 : f32 to vector<8x16xf32>
    %27 = vector.broadcast %cst_11 : f32 to vector<8x16xf32>
    %28 = arith.select %25, %26, %27 : vector<8x16xi1>, vector<8x16xf32>
    %cst_12 = arith.constant 0xFF800000 : f32
    %29 = vector.broadcast %cst_12 : f32 to vector<8x16xf32>
    %30 = arith.select %20, %8, %29 : vector<8x16xi1>, vector<8x16xf32>
    %31 = arith.subf %30, %28 : vector<8x16xf32>
    %32 = arith.index_cast %4 : i32 to index
    %c0_13 = arith.constant 0 : index
    %33 = vector.load %arg14[%32, %c0_13] : memref<16x4xf32, #tpu.memory_space<vmem>>, vector<8x4xf32>
    %c0_14 = arith.constant 0 : index
    %c0_15 = arith.constant 0 : index
    %34 = vector.load %arg15[%c0_14, %c0_15] : memref<4x16xf32, #tpu.memory_space<vmem>>, vector<4x16xf32>
    %35 = vector.extract_strided_slice %33 {offsets = [0, 0], sizes = [8, 1], strides = [1, 1]} : vector<8x4xf32> to vector<8x1xf32>
    %36 = vector.broadcast %35 : vector<8x1xf32> to vector<8x16xf32>
    %37 = arith.addf %31, %36 : vector<8x16xf32>
    %38 = vector.extract_strided_slice %34 {offsets = [0, 0], sizes = [1, 16], strides = [1, 1]} : vector<4x16xf32> to vector<1x16xf32>
    %39 = vector.broadcast %38 : vector<1x16xf32> to vector<8x16xf32>
    %40 = arith.addf %37, %39 : vector<8x16xf32>
    %c0_16 = arith.constant 0 : index
    %c0_17 = arith.constant 0 : index
    %c0_18 = arith.constant 0 : index
    %c0_19 = arith.constant 0 : index
    %41 = vector.load %arg11[%c0_16, %c0_17, %c0_18, %c0_19] : memref<1x4x8x16xf32, #tpu.memory_space<vmem>>, vector<1x1x8x16xf32>
    %42 = vector.shape_cast %41 : vector<1x1x8x16xf32> to vector<8x16xf32>
    %43 = vector.shape_cast %40 : vector<8x16xf32> to vector<1x1x8x16xf32>
    tpu.vector_store %arg11[%c0_16, %c0_17, %c0_18, %c0_19], %43 {strides = array<i32>} : memref<1x4x8x16xf32, #tpu.memory_space<vmem>>, vector<1x1x8x16xf32>,
    %44 = vector.extract_strided_slice %33 {offsets = [0, 1], sizes = [8, 1], strides = [1, 1]} : vector<8x4xf32> to vector<8x1xf32>
    %45 = vector.broadcast %44 : vector<8x1xf32> to vector<8x16xf32>
    %46 = arith.addf %31, %45 : vector<8x16xf32>
    %47 = vector.extract_strided_slice %34 {offsets = [1, 0], sizes = [1, 16], strides = [1, 1]} : vector<4x16xf32> to vector<1x16xf32>
    %48 = vector.broadcast %47 : vector<1x16xf32> to vector<8x16xf32>
    %49 = arith.addf %46, %48 : vector<8x16xf32>
    %c0_20 = arith.constant 0 : index
    %c1 = arith.constant 1 : index
    %c0_21 = arith.constant 0 : index
    %c0_22 = arith.constant 0 : index
    %50 = vector.load %arg11[%c0_20, %c1, %c0_21, %c0_22] : memref<1x4x8x16xf32, #tpu.memory_space<vmem>>, vector<1x1x8x16xf32>
    %51 = vector.shape_cast %50 : vector<1x1x8x16xf32> to vector<8x16xf32>
    %52 = vector.shape_cast %49 : vector<8x16xf32> to vector<1x1x8x16xf32>
    tpu.vector_store %arg11[%c0_20, %c1, %c0_21, %c0_22], %52 {strides = array<i32>} : memref<1x4x8x16xf32, #tpu.memory_space<vmem>>, vector<1x1x8x16xf32>,
    %53 = vector.extract_strided_slice %33 {offsets = [0, 2], sizes = [8, 1], strides = [1, 1]} : vector<8x4xf32> to vector<8x1xf32>
    %54 = vector.broadcast %53 : vector<8x1xf32> to vector<8x16xf32>
    %55 = arith.addf %31, %54 : vector<8x16xf32>
    %56 = vector.extract_strided_slice %34 {offsets = [2, 0], sizes = [1, 16], strides = [1, 1]} : vector<4x16xf32> to vector<1x16xf32>
    %57 = vector.broadcast %56 : vector<1x16xf32> to vector<8x16xf32>
    %58 = arith.addf %55, %57 : vector<8x16xf32>
    %c0_23 = arith.constant 0 : index
    %c2 = arith.constant 2 : index
    %c0_24 = arith.constant 0 : index
    %c0_25 = arith.constant 0 : index
    %59 = vector.load %arg11[%c0_23, %c2, %c0_24, %c0_25] : memref<1x4x8x16xf32, #tpu.memory_space<vmem>>, vector<1x1x8x16xf32>
    %60 = vector.shape_cast %59 : vector<1x1x8x16xf32> to vector<8x16xf32>
    %61 = vector.shape_cast %58 : vector<8x16xf32> to vector<1x1x8x16xf32>
    tpu.vector_store %arg11[%c0_23, %c2, %c0_24, %c0_25], %61 {strides = array<i32>} : memref<1x4x8x16xf32, #tpu.memory_space<vmem>>, vector<1x1x8x16xf32>,
    %62 = vector.extract_strided_slice %33 {offsets = [0, 3], sizes = [8, 1], strides = [1, 1]} : vector<8x4xf32> to vector<8x1xf32>
    %63 = vector.broadcast %62 : vector<8x1xf32> to vector<8x16xf32>
    %64 = arith.addf %31, %63 : vector<8x16xf32>
    %65 = vector.extract_strided_slice %34 {offsets = [3, 0], sizes = [1, 16], strides = [1, 1]} : vector<4x16xf32> to vector<1x16xf32>
    %66 = vector.broadcast %65 : vector<1x16xf32> to vector<8x16xf32>
    %67 = arith.addf %64, %66 : vector<8x16xf32>
    %c0_26 = arith.constant 0 : index
    %c3 = arith.constant 3 : index
    %c0_27 = arith.constant 0 : index
    %c0_28 = arith.constant 0 : index
    %68 = vector.load %arg11[%c0_26, %c3, %c0_27, %c0_28] : memref<1x4x8x16xf32, #tpu.memory_space<vmem>>, vector<1x1x8x16xf32>
    %69 = vector.shape_cast %68 : vector<1x1x8x16xf32> to vector<8x16xf32>
    %70 = vector.shape_cast %67 : vector<8x16xf32> to vector<1x1x8x16xf32>
    tpu.vector_store %arg11[%c0_26, %c3, %c0_27, %c0_28], %70 {strides = array<i32>} : memref<1x4x8x16xf32, #tpu.memory_space<vmem>>, vector<1x1x8x16xf32>,
    return
  }
  func.func @transform_0(%arg0: i32, %arg1: i32) -> (i32, i32, i32) {
    %c0_i32 = arith.constant 0 : i32
    %c0_i32_0 = arith.constant 0 : i32
    %c0_i32_1 = arith.constant 0 : i32
    return %arg0, %c0_i32, %c0_i32_0 : i32, i32, i32
  }
  func.func @transform_1(%arg0: i32, %arg1: i32) -> (i32, i32) {
    %c0_i32 = arith.constant 0 : i32
    %c0_i32_0 = arith.constant 0 : i32
    %c0_i32_1 = arith.constant 0 : i32
    return %c0_i32, %c0_i32_0 : i32, i32
  }
  func.func @transform_2(%arg0: i32, %arg1: i32) -> (i32, i32) {
    %c0_i32 = arith.constant 0 : i32
    %c0_i32_0 = arith.constant 0 : i32
    %c0_i32_1 = arith.constant 0 : i32
    return %c0_i32, %c0_i32_0 : i32, i32
  }
  func.func @transform_3(%arg0: i32, %arg1: i32) -> (i32, i32) {
    %c0_i32 = arith.constant 0 : i32
    %c0_i32_0 = arith.constant 0 : i32
    %c0_i32_1 = arith.constant 0 : i32
    return %c0_i32, %c0_i32_0 : i32, i32
  }
  func.func @transform_4(%arg0: i32, %arg1: i32) -> (i32, i32) {
    %c0_i32 = arith.constant 0 : i32
    %c0_i32_0 = arith.constant 0 : i32
    %c0_i32_1 = arith.constant 0 : i32
    return %c0_i32, %c0_i32_0 : i32, i32
  }
  func.func @transform_5(%arg0: i32, %arg1: i32) -> (i32, i32) {
    %c0_i32 = arith.constant 0 : i32
    %c0_i32_0 = arith.constant 0 : i32
    %c0_i32_1 = arith.constant 0 : i32
    return %c0_i32, %c0_i32_0 : i32, i32
  }
  func.func @transform_6(%arg0: i32, %arg1: i32) -> (i32, i32) {
    %c0_i32 = arith.constant 0 : i32
    %c0_i32_0 = arith.constant 0 : i32
    %c0_i32_1 = arith.constant 0 : i32
    return %c0_i32, %c0_i32_0 : i32, i32
  }
  func.func @transform_7(%arg0: i32, %arg1: i32) -> (i32, i32, i32) {
    %c0_i32 = arith.constant 0 : i32
    %c0_i32_0 = arith.constant 0 : i32
    %c0_i32_1 = arith.constant 0 : i32
    return %arg0, %c0_i32, %c0_i32_0 : i32, i32, i32
  }
  func.func @transform_8(%arg0: i32, %arg1: i32) -> (i32, i32, i32) {
    %c0_i32 = arith.constant 0 : i32
    %c0_i32_0 = arith.constant 0 : i32
    %c0_i32_1 = arith.constant 0 : i32
    return %arg0, %c0_i32, %c0_i32_0 : i32, i32, i32
  }
  func.func @transform_9(%arg0: i32, %arg1: i32) -> (i32, i32, i32, i32) {
    %c0_i32 = arith.constant 0 : i32
    %c0_i32_0 = arith.constant 0 : i32
    %c0_i32_1 = arith.constant 0 : i32
    return %arg0, %c0_i32, %arg1, %c0_i32_0 : i32, i32, i32, i32
  }
}

</mosaic_0001>

<llo_original>
// kernel: tpu_custom_call.1
$region0: #{tpu_custom_call.1}
  #allocation0 [shape = 'u32[]', space=smem, size = 0x4, offset = 0x4, fixed_abs, tag = 'smem constant byte address 0x4 - core index']
  #allocation1 [shape = 'u32[144,128]{1,0:T(1,128)}', space=vmem, size = 0x12000, scoped, tag = 'internal scratch']
  #allocation2 [shape = 'f32[16,16]{1,0:T(8,128)}', space=vmem, size = 0x2000, scoped, tag = 'scratch operand']
  #allocation3 [shape = 'f32[16,16]{1,0:T(8,128)}', space=vmem, size = 0x2000, scoped, tag = 'scratch operand']
  #allocation4 [shape = 'f32[16,4]{1,0:T(8,128)}', space=vmem, size = 0x2000, scoped, tag = 'scratch operand']
  #allocation5 [shape = 'f32[4,16]{1,0:T(4,128)}', space=vmem, size = 0x800, scoped, tag = 'scratch operand']
  %s0 = inlined_call_operand.vmem [shape: f32[2,16,32], index: 0, kind: input, shape index: {}]
  %s1 = inlined_call_operand.vmem [shape: f32[32,36], index: 1, kind: input, shape index: {}]
  %s2 = inlined_call_operand.vmem [shape: f32[1,36], index: 2, kind: input, shape index: {}]
  %s3 = inlined_call_operand.vmem [shape: f32[32,4], index: 3, kind: input, shape index: {}]
  %s4 = inlined_call_operand.vmem [shape: f32[4,1], index: 4, kind: input, shape index: {}]
  %s5 = inlined_call_operand.vmem [shape: f32[16,8], index: 5, kind: input, shape index: {}]
  %s6 = inlined_call_operand.vmem [shape: f32[16,8], index: 6, kind: input, shape index: {}]
  %s7 = inlined_call_operand.vmem [shape: f32[2,16,1], index: 7, kind: input, shape index: {}]
  %s8 = inlined_call_operand.vmem [shape: f32[2,1,16], index: 8, kind: input, shape index: {}]
  %s9 = inlined_call_operand.hbm [shape: f32[2,4,16,16], index: 9, kind: output, shape index: {}]
  %s10 = sld [smem:[#allocation0]]
  $region73: #{tpu_custom_call.1} parent=0
    _
  %s12 = ssub.s32 1, %s10
  %s13 = scalar_select 0, %s12, %s10
  $region1: #{tpu_custom_call.1} parent=0
    #allocation6 [shape = 'u8[32768]{0}', space=vmem, size = 0x8000, scoped, tag = 'output window, operand 0']
    #allocation7 [shape = 's32[2]{0}', space=sflag, size = 0x8, scoped, tag = 'scoped memory for tpu_custom_call.1']
    %14 = vsyncpa [#allocation7], 0
    %s15 = scalar_lea.sflag [#allocation7], 1
    %16 = vsyncpa %s15, 0
    loop: start=0, step=1, limit=6
    $region2: #{tpu_custom_call.1} parent=1 // loop_pre_header
      _
    $region3: #{tpu_custom_call.1} parent=1 // loop_header
      %s18 = sphi 0, %s22
      %p19 = scmp.ge.s32.totalorder %s18, 6
      %s25 = sphi 0, %s37
      %s26 = sphi 0, %s33
      %s27 = sphi 0, %s25
      %s28 = sphi 0, %s26
      %s29 = sphi 0, %s27
      %s30 = sphi 0, %s28
      %s40 = sphi 0, %s42
      %s43 = sphi 0, %s40
      %s44 = sphi 0, %s43
      %s60 = sphi 0, %s44
      %s64 = sphi 0, %s64
      %s66 = sphi 0, %s64
      %s67 = sphi 0, %s66
      %s81 = sphi 0, %s67
      %s85 = sphi 0, %s85
      %s87 = sphi 0, %s85
      %s88 = sphi 0, %s87
      %s102 = sphi 0, %s88
      %s106 = sphi 0, %s106
      %s108 = sphi 0, %s106
      %s109 = sphi 0, %s108
      %s123 = sphi 0, %s109
      %s127 = sphi 0, %s127
      %s129 = sphi 0, %s127
      %s130 = sphi 0, %s129
      %s144 = sphi 0, %s130
      %s148 = sphi 0, %s148
      %s150 = sphi 0, %s148
      %s151 = sphi 0, %s150
      %s165 = sphi 0, %s151
      %s169 = sphi 0, %s169
      %s171 = sphi 0, %s169
      %s172 = sphi 0, %s171
      %s186 = sphi 0, %s172
      %s192 = sphi 0, %s194
      %s195 = sphi 0, %s192
      %s196 = sphi 0, %s195
      %s212 = sphi 0, %s196
      %s218 = sphi 0, %s220
      %s221 = sphi 0, %s218
      %s222 = sphi 0, %s221
      %s238 = sphi 0, %s222
      %s246 = sphi 0, %s248
      %s249 = sphi 0, %s246
      %s250 = sphi 0, %s249
      %s266 = sphi 0, %s250
    $region4: #{tpu_custom_call.1} parent=1 // loop_header_branch
      %21 = sbr.rel (%p19) target = $region8
    $region5: #{tpu_custom_call.1} parent=1 // loop_body
      %s23 = ssub.s32 %s18, 1
      %s24 = ssub.s32 %s18, 2
      %s31 = sadd.s32 1, %s26
      %p32 = scmp.ge.s32.totalorder %s31, 2
      %s33 = scalar_select %p32, 0, %s31
      %s34 = sadd.s32 1, %s25
      %s35 = scalar_select %p32, %s34, %s25
      %p36 = scmp.ge.s32.totalorder %s35, 2
      %s37 = scalar_select %p36, 0, %s35
      %s38 = ssub.s32 %s25, %s37
      %p39 = scmp.eq.s32.totalorder %s38, 0
      %s41 = sadd.s32 %s40, 1
      %s42 = scalar_select %p39, %s40, %s41
      %p45 = pneg %p39
      %p46 = scmp.eq.s32.totalorder %s18, 3
      %p47 = por %p45, %p46
      %p48 = scmp.ne.s32.totalorder %s40, %s43
      %p49 = scmp.eq.s32.totalorder %s18, 0
      %p50 = por %p48, %p49
      %p51 = scmp.ne.s32.totalorder %s40, %s43
      %p52 = scmp.eq.s32.totalorder %s23, 3
      %p53 = por %p51, %p52
      %p54 = scmp.ne.s32.totalorder %s43, %s44
      %p55 = scmp.eq.s32.totalorder %s23, 0
      %p56 = por %p54, %p55
      %p57 = scmp.ne.s32.totalorder %s43, %s44
      %p58 = scmp.eq.s32.totalorder %s24, 3
      %p59 = por %p57, %p58
      %p61 = scmp.ne.s32.totalorder %s44, %s60
      %p62 = scmp.eq.s32.totalorder %s24, 0
      %p63 = por %p61, %p62
      %s65 = sadd.s32 %s64, 1
      %p68 = scmp.eq.s32.totalorder %s18, 3
      %p69 = scmp.ne.s32.totalorder %s64, %s66
      %p70 = scmp.eq.s32.totalorder %s18, 0
      %p71 = por %p69, %p70
      %p72 = scmp.ne.s32.totalorder %s64, %s66
      %p73 = scmp.eq.s32.totalorder %s23, 3
      %p74 = por %p72, %p73
      %p75 = scmp.ne.s32.totalorder %s66, %s67
      %p76 = scmp.eq.s32.totalorder %s23, 0
      %p77 = por %p75, %p76
      %p78 = scmp.ne.s32.totalorder %s66, %s67
      %p79 = scmp.eq.s32.totalorder %s24, 3
      %p80 = por %p78, %p79
      %p82 = scmp.ne.s32.totalorder %s67, %s81
      %p83 = scmp.eq.s32.totalorder %s24, 0
      %p84 = por %p82, %p83
      %s86 = sadd.s32 %s85, 1
      %p89 = scmp.eq.s32.totalorder %s18, 3
      %p90 = scmp.ne.s32.totalorder %s85, %s87
      %p91 = scmp.eq.s32.totalorder %s18, 0
      %p92 = por %p90, %p91
      %p93 = scmp.ne.s32.totalorder %s85, %s87
      %p94 = scmp.eq.s32.totalorder %s23, 3
      %p95 = por %p93, %p94
      %p96 = scmp.ne.s32.totalorder %s87, %s88
      %p97 = scmp.eq.s32.totalorder %s23, 0
      %p98 = por %p96, %p97
      %p99 = scmp.ne.s32.totalorder %s87, %s88
      %p100 = scmp.eq.s32.totalorder %s24, 3
      %p101 = por %p99, %p100
      %p103 = scmp.ne.s32.totalorder %s88, %s102
      %p104 = scmp.eq.s32.totalorder %s24, 0
      %p105 = por %p103, %p104
      %s107 = sadd.s32 %s106, 1
      %p110 = scmp.eq.s32.totalorder %s18, 3
      %p111 = scmp.ne.s32.totalorder %s106, %s108
      %p112 = scmp.eq.s32.totalorder %s18, 0
      %p113 = por %p111, %p112
      %p114 = scmp.ne.s32.totalorder %s106, %s108
      %p115 = scmp.eq.s32.totalorder %s23, 3
      %p116 = por %p114, %p115
      %p117 = scmp.ne.s32.totalorder %s108, %s109
      %p118 = scmp.eq.s32.totalorder %s23, 0
      %p119 = por %p117, %p118
      %p120 = scmp.ne.s32.totalorder %s108, %s109
      %p121 = scmp.eq.s32.totalorder %s24, 3
      %p122 = por %p120, %p121
      %p124 = scmp.ne.s32.totalorder %s109, %s123
      %p125 = scmp.eq.s32.totalorder %s24, 0
      %p126 = por %p124, %p125
      %s128 = sadd.s32 %s127, 1
      %p131 = scmp.eq.s32.totalorder %s18, 3
      %p132 = scmp.ne.s32.totalorder %s127, %s129
      %p133 = scmp.eq.s32.totalorder %s18, 0
      %p134 = por %p132, %p133
      %p135 = scmp.ne.s32.totalorder %s127, %s129
      %p136 = scmp.eq.s32.totalorder %s23, 3
      %p137 = por %p135, %p136
      %p138 = scmp.ne.s32.totalorder %s129, %s130
      %p139 = scmp.eq.s32.totalorder %s23, 0
      %p140 = por %p138, %p139
      %p141 = scmp.ne.s32.totalorder %s129, %s130
      %p142 = scmp.eq.s32.totalorder %s24, 3
      %p143 = por %p141, %p142
      %p145 = scmp.ne.s32.totalorder %s130, %s144
      %p146 = scmp.eq.s32.totalorder %s24, 0
      %p147 = por %p145, %p146
      %s149 = sadd.s32 %s148, 1
      %p152 = scmp.eq.s32.totalorder %s18, 3
      %p153 = scmp.ne.s32.totalorder %s148, %s150
      %p154 = scmp.eq.s32.totalorder %s18, 0
      %p155 = por %p153, %p154
      %p156 = scmp.ne.s32.totalorder %s148, %s150
      %p157 = scmp.eq.s32.totalorder %s23, 3
      %p158 = por %p156, %p157
      %p159 = scmp.ne.s32.totalorder %s150, %s151
      %p160 = scmp.eq.s32.totalorder %s23, 0
      %p161 = por %p159, %p160
      %p162 = scmp.ne.s32.totalorder %s150, %s151
      %p163 = scmp.eq.s32.totalorder %s24, 3
      %p164 = por %p162, %p163
      %p166 = scmp.ne.s32.totalorder %s151, %s165
      %p167 = scmp.eq.s32.totalorder %s24, 0
      %p168 = por %p166, %p167
      %s170 = sadd.s32 %s169, 1
      %p173 = scmp.eq.s32.totalorder %s18, 3
      %p174 = scmp.ne.s32.totalorder %s169, %s171
      %p175 = scmp.eq.s32.totalorder %s18, 0
      %p176 = por %p174, %p175
      %p177 = scmp.ne.s32.totalorder %s169, %s171
      %p178 = scmp.eq.s32.totalorder %s23, 3
      %p179 = por %p177, %p178
      %p180 = scmp.ne.s32.totalorder %s171, %s172
      %p181 = scmp.eq.s32.totalorder %s23, 0
      %p182 = por %p180, %p181
      %p183 = scmp.ne.s32.totalorder %s171, %s172
      %p184 = scmp.eq.s32.totalorder %s24, 3
      %p185 = por %p183, %p184
      %p187 = scmp.ne.s32.totalorder %s172, %s186
      %p188 = scmp.eq.s32.totalorder %s24, 0
      %p189 = por %p187, %p188
      %s190 = ssub.s32 %s25, %s37
      %p191 = scmp.eq.s32.totalorder %s190, 0
      %s193 = sadd.s32 %s192, 1
      %s194 = scalar_select %p191, %s192, %s193
      %p197 = pneg %p191
      %p198 = scmp.eq.s32.totalorder %s18, 3
      %p199 = por %p197, %p198
      %p200 = scmp.ne.s32.totalorder %s192, %s195
      %p201 = scmp.eq.s32.totalorder %s18, 0
      %p202 = por %p200, %p201
      %p203 = scmp.ne.s32.totalorder %s192, %s195
      %p204 = scmp.eq.s32.totalorder %s23, 3
      %p205 = por %p203, %p204
      %p206 = scmp.ne.s32.totalorder %s195, %s196
      %p207 = scmp.eq.s32.totalorder %s23, 0
      %p208 = por %p206, %p207
      %p209 = scmp.ne.s32.totalorder %s195, %s196
      %p210 = scmp.eq.s32.totalorder %s24, 3
      %p211 = por %p209, %p210
      %p213 = scmp.ne.s32.totalorder %s196, %s212
      %p214 = scmp.eq.s32.totalorder %s24, 0
      %p215 = por %p213, %p214
      %s216 = ssub.s32 %s25, %s37
      %p217 = scmp.eq.s32.totalorder %s216, 0
      %s219 = sadd.s32 %s218, 1
      %s220 = scalar_select %p217, %s218, %s219
      %p223 = pneg %p217
      %p224 = scmp.eq.s32.totalorder %s18, 3
      %p225 = por %p223, %p224
      %p226 = scmp.ne.s32.totalorder %s218, %s221
      %p227 = scmp.eq.s32.totalorder %s18, 0
      %p228 = por %p226, %p227
      %p229 = scmp.ne.s32.totalorder %s218, %s221
      %p230 = scmp.eq.s32.totalorder %s23, 3
      %p231 = por %p229, %p230
      %p232 = scmp.ne.s32.totalorder %s221, %s222
      %p233 = scmp.eq.s32.totalorder %s23, 0
      %p234 = por %p232, %p233
      %p235 = scmp.ne.s32.totalorder %s221, %s222
      %p236 = scmp.eq.s32.totalorder %s24, 3
      %p237 = por %p235, %p236
      %p239 = scmp.ne.s32.totalorder %s222, %s238
      %p240 = scmp.eq.s32.totalorder %s24, 0
      %p241 = por %p239, %p240
      %s242 = ssub.s32 %s25, %s37
      %s243 = ssub.s32 %s26, %s33
      %s244 = sor.u32 %s242, %s243
      %p245 = scmp.eq.s32.totalorder %s244, 0
      %s247 = sadd.s32 %s246, 1
      %s248 = scalar_select %p245, %s246, %s247
      %p251 = pneg %p245
      %p252 = scmp.eq.s32.totalorder %s18, 3
      %p253 = por %p251, %p252
      %p254 = scmp.ne.s32.totalorder %s246, %s249
      %p255 = scmp.eq.s32.totalorder %s18, 0
      %p256 = por %p254, %p255
      %p257 = scmp.ne.s32.totalorder %s246, %s249
      %p258 = scmp.eq.s32.totalorder %s23, 3
      %p259 = por %p257, %p258
      %p260 = scmp.ne.s32.totalorder %s249, %s250
      %p261 = scmp.eq.s32.totalorder %s23, 0
      %p262 = por %p260, %p261
      %p263 = scmp.ne.s32.totalorder %s249, %s250
      %p264 = scmp.eq.s32.totalorder %s24, 3
      %p265 = por %p263, %p264
      %p267 = scmp.ne.s32.totalorder %s250, %s266
      %p268 = scmp.eq.s32.totalorder %s24, 0
      %p269 = por %p267, %p268
      %p270 = scmp.le.s32.totalorder 1, %s18
      %p271 = scmp.lt.s32.totalorder %s18, 5
      %p272 = pnand %p270, %p271
      %p273 = pneg %p272
      // Predicated region
      $region9: #{tpu_custom_call.1} parent=5 // pred_check
        _
      $region10: #{tpu_custom_call.1} parent=5 // pred_check_branch
        %275 = sbr.rel (%p272) target = $region12
      $region11: #{tpu_custom_call.1} parent=5 // pred_region
        %s276 = ssub.s32 %s18, 1
        // Predicated region
        $region13: #{tpu_custom_call.1} parent=11 // pred_check
          %p277 = pneg %p77
        $region14: #{tpu_custom_call.1} parent=11 // pred_check_branch
          %279 = sbr.rel (%p277) target = $region16
        $region15: #{tpu_custom_call.1} parent=11 // pred_region
          _
        $region16: #{tpu_custom_call.1} parent=11 // pred_fallthru
          _
        // Predicated region
        $region17: #{tpu_custom_call.1} parent=11 // pred_check
          %p280 = pneg %p98
        $region18: #{tpu_custom_call.1} parent=11 // pred_check_branch
          %282 = sbr.rel (%p280) target = $region20
        $region19: #{tpu_custom_call.1} parent=11 // pred_region
          _
        $region20: #{tpu_custom_call.1} parent=11 // pred_fallthru
          _
        // Predicated region
        $region21: #{tpu_custom_call.1} parent=11 // pred_check
          %p283 = pneg %p119
        $region22: #{tpu_custom_call.1} parent=11 // pred_check_branch
          %285 = sbr.rel (%p283) target = $region24
        $region23: #{tpu_custom_call.1} parent=11 // pred_region
          _
        $region24: #{tpu_custom_call.1} parent=11 // pred_fallthru
          _
        // Predicated region
        $region25: #{tpu_custom_call.1} parent=11 // pred_check
          %p286 = pneg %p140
        $region26: #{tpu_custom_call.1} parent=11 // pred_check_branch
          %288 = sbr.rel (%p286) target = $region28
        $region27: #{tpu_custom_call.1} parent=11 // pred_region
          _
        $region28: #{tpu_custom_call.1} parent=11 // pred_fallthru
          _
        // Predicated region
        $region29: #{tpu_custom_call.1} parent=11 // pred_check
          %p289 = pneg %p161
        $region30: #{tpu_custom_call.1} parent=11 // pred_check_branch
          %291 = sbr.rel (%p289) target = $region32
        $region31: #{tpu_custom_call.1} parent=11 // pred_region
          _
        $region32: #{tpu_custom_call.1} parent=11 // pred_fallthru
          _
        // Predicated region
        $region33: #{tpu_custom_call.1} parent=11 // pred_check
          %p292 = pneg %p182
        $region34: #{tpu_custom_call.1} parent=11 // pred_check_branch
          %294 = sbr.rel (%p292) target = $region36
        $region35: #{tpu_custom_call.1} parent=11 // pred_region
          _
        $region36: #{tpu_custom_call.1} parent=11 // pred_fallthru
          _
      $region12: #{tpu_custom_call.1} parent=5 // pred_fallthru
        _
      %p295 = scmp.lt.s32.totalorder %s18, 4
      // Predicated region
      $region37: #{tpu_custom_call.1} parent=5 // pred_check
        %p296 = pneg %p295
      $region38: #{tpu_custom_call.1} parent=5 // pred_check_branch
        %298 = sbr.rel (%p296) target = $region40
      $region39: #{tpu_custom_call.1} parent=5 // pred_region
        // Predicated region
        $region41: #{tpu_custom_call.1} parent=39 // pred_check
          %p299 = pneg %p50
        $region42: #{tpu_custom_call.1} parent=39 // pred_check_branch
          %301 = sbr.rel (%p299) target = $region44
        $region43: #{tpu_custom_call.1} parent=39 // pred_region
          %p302 = scmp.lt.s32.totalorder %s25, 1
          %s303 = scalar_select %p302, %s25, 1
          %s304 = smul.addr %s303, 2
          %s305 = smul.addr %s304, 8
          %s306 = scalar_lea.vmem %s0, %s305
        $region44: #{tpu_custom_call.1} parent=39 // pred_fallthru
          _
        // Predicated region
        $region45: #{tpu_custom_call.1} parent=39 // pred_check
          %p307 = pneg %p202
        $region46: #{tpu_custom_call.1} parent=39 // pred_check_branch
          %309 = sbr.rel (%p307) target = $region48
        $region47: #{tpu_custom_call.1} parent=39 // pred_region
          %p310 = scmp.lt.s32.totalorder %s25, 1
          %s311 = scalar_select %p310, %s25, 1
          %s312 = smul.addr %s311, 2
          %s313 = smul.addr %s312, 8
          %s314 = scalar_lea.vmem %s7, %s313
        $region48: #{tpu_custom_call.1} parent=39 // pred_fallthru
          _
        // Predicated region
        $region49: #{tpu_custom_call.1} parent=39 // pred_check
          %p315 = pneg %p228
        $region50: #{tpu_custom_call.1} parent=39 // pred_check_branch
          %317 = sbr.rel (%p315) target = $region52
        $region51: #{tpu_custom_call.1} parent=39 // pred_region
          %p318 = scmp.lt.s32.totalorder %s25, 1
          %s319 = scalar_select %p318, %s25, 1
          %s320 = scalar_lea.vmem %s8, %s319
        $region52: #{tpu_custom_call.1} parent=39 // pred_fallthru
          _
      $region40: #{tpu_custom_call.1} parent=5 // pred_fallthru
        _
      %p321 = scmp.le.s32.totalorder 1, %s18
      %p322 = scmp.lt.s32.totalorder %s18, 5
      %p323 = pnand %p321, %p322
      %p324 = pneg %p323
      // Predicated region
      $region53: #{tpu_custom_call.1} parent=5 // pred_check
        _
      $region54: #{tpu_custom_call.1} parent=5 // pred_check_branch
        %326 = sbr.rel (%p323) target = $region56
      $region55: #{tpu_custom_call.1} parent=5 // pred_region
        %s327 = ssub.s32 %s18, 1
        %p328 = scmp.lt.s32.totalorder %s27, 1
        %s329 = scalar_select %p328, %s27, 1
        %s330 = smul.addr %s329, 2
        %s331 = smul.addr %s330, 8
        %s332 = scalar_lea.vmem %s0, %s331
        %p333 = pneg %p56
        %p334 = pneg %p53
        %p335 = pneg %p77
        %p336 = pneg %p74
        %p337 = pneg %p98
        %p338 = pneg %p95
        %p339 = pneg %p119
        %p340 = pneg %p116
        %p341 = pneg %p140
        %p342 = pneg %p137
        %p343 = pneg %p161
        %p344 = pneg %p158
        %p345 = pneg %p182
        %p346 = pneg %p179
        %p347 = scmp.lt.s32.totalorder %s27, 1
        %s348 = scalar_select %p347, %s27, 1
        %s349 = smul.addr %s348, 2
        %s350 = smul.addr %s349, 8
        %s351 = scalar_lea.vmem %s7, %s350
        %p352 = pneg %p208
        %p353 = pneg %p205
        %p354 = scmp.lt.s32.totalorder %s27, 1
        %s355 = scalar_select %p354, %s27, 1
        %s356 = scalar_lea.vmem %s8, %s355
        %p357 = pneg %p234
        %p358 = pneg %p231
        %p359 = pneg %p262
        %p360 = pneg %p259
        %s361 = sand.u32 %s249, 1
        %s362 = scalar_lea.sflag [#allocation7], %s361
        %s363 = sand.u32 %s249, 1
        %s364 = smul.addr %s363, 32
        %s365 = scalar_lea.vmem [#allocation6], %s364
        %p366 = scmp.lt.s32.totalorder %s27, 1
        %s367 = scalar_select %p366, %s27, 1
        %s368 = smul.addr %s367, 2
        %s369 = smul.addr %s368, 8
        %s370 = scalar_lea.vmem %s0, %s369
        %p371 = scmp.lt.s32.totalorder %s27, 1
        %s372 = scalar_select %p371, %s27, 1
        %s373 = smul.addr %s372, 2
        %s374 = smul.addr %s373, 8
        %s375 = scalar_lea.vmem %s7, %s374
        %p376 = scmp.lt.s32.totalorder %s27, 1
        %s377 = scalar_select %p376, %s27, 1
        %s378 = scalar_lea.vmem %s8, %s377
        %p379 = scmp.eq.s32.totalorder %s28, 0
        // Predicated region
        $region57: #{tpu_custom_call.1} parent=55 // pred_check
          %p380 = pneg %p379
        $region58: #{tpu_custom_call.1} parent=55 // pred_check_branch
          %382 = sbr.rel (%p380) target = $region60
        $region59: #{tpu_custom_call.1} parent=55 // pred_region
          %v383 = vld [vmem:[%s370] sm:$0xff]
          %v384 = vld [vmem:[%s370 + $0x8] sm:$0xff]
          %v385 = vld [vmem:[%s1] sm:$0xff]
          %v386 = vld [vmem:[%s1 + $0x8] sm:$0xff]
          %v387 = vld [vmem:[%s1 + $0x10] sm:$0xff]
          %v388 = vld [vmem:[%s1 + $0x18] sm:$0xff]
          %v389 = vld [vmem:[%s2] sm:$0x1]
          %v391 = vlaneseq
          %v392 = vshrl.u32 %v391, 7
          %v393 = vsub.s32 0, %v392
          %v394 = vrot.slane %v389, %v393
          %vm396 = vcmask 261120
          %v398 = vsel %vm396, %v383, 0
          %v401 = vsel %vm396, %v384, 0
          %403 = vmatprep.subr.mxu0 0.0
          %404 = vmatpush1.msra.mxu0 %v385
          %405 = vmatprep.subr.mxu0 0.0
          %406 = vmatpush1.msra.mxu0 %v386
          %407 = vmatprep.subr.mxu0 0.0
          %408 = vmatpush1.msra.mxu0 %v387
          %409 = vmatprep.subr.mxu0 0.0
          %410 = vmatpush1.msra.mxu0 %v388
          %411 = vmatprep.subr.mxu0 0.0
          %412 = vmatpush1.msra.mxu0 0.0
          %413 = vmatprep.subr.mxu0 0.0
          %414 = vmatpush1.msra.mxu0 0.0
          %415 = vmatprep.subr.mxu0 0.0
          %416 = vmatpush1.msra.mxu0 0.0
          %417 = vmatprep.subr.mxu0 0.0
          %418 = vmatpush1.msra.mxu0 0.0
          %419 = vmatprep.subr.mxu0 0.0
          %420 = vmatpush1.msra.mxu0 0.0
          %421 = vmatprep.subr.mxu0 0.0
          %422 = vmatpush1.msra.mxu0 0.0
          %423 = vmatprep.subr.mxu0 0.0
          %424 = vmatpush1.msra.mxu0 0.0
          %425 = vmatprep.subr.mxu0 0.0
          %426 = vmatpush1.msra.mxu0 0.0
          %427 = vmatprep.subr.mxu0 0.0
          %428 = vmatpush1.msra.mxu0 0.0
          %429 = vmatprep.subr.mxu0 0.0
          %430 = vmatpush1.msra.mxu0 0.0
          %431 = vmatprep.subr.mxu0 0.0
          %432 = vmatpush1.msra.mxu0 0.0
          %433 = vmatprep.subr.mxu0 0.0
          %434 = vmatpush1.msra.mxu0 0.0
          %435 = vmatprep.subr.mxu0 0.0
          %436 = vmatpush1.msra.mxu0 0.0
          %437 = vmatprep.subr.mxu0 0.0
          %438 = vmatpush1.msra.mxu0 0.0
          %439 = vmatprep.subr.mxu0 0.0
          %440 = vmatpush1.msra.mxu0 0.0
          %441 = vmatprep.subr.mxu0 0.0
          %442 = vmatpush1.msra.mxu0 0.0
          %443 = vmatprep.subr.mxu0 0.0
          %444 = vmatpush1.msra.mxu0 0.0
          %445 = vmatprep.subr.mxu0 0.0
          %446 = vmatpush1.msra.mxu0 0.0
          %447 = vmatprep.subr.mxu0 0.0
          %448 = vmatpush1.msra.mxu0 0.0
          %449 = vmatprep.subr.mxu0 0.0
          %450 = vmatpush1.msra.mxu0 0.0
          %451 = vmatprep.subr.mxu0 0.0
          %452 = vmatpush1.msra.mxu0 0.0
          %453 = vmatprep.subr.mxu0 0.0
          %454 = vmatpush1.msra.mxu0 0.0
          %455 = vmatprep.subr.mxu0 0.0
          %456 = vmatpush1.msra.mxu0 0.0
          %457 = vmatprep.subr.mxu0 0.0
          %458 = vmatpush1.msra.mxu0 0.0
          %459 = vmatprep.subr.mxu0 0.0
          %460 = vmatpush1.msra.mxu0 0.0
          %461 = vmatprep.subr.mxu0 0.0
          %462 = vmatpush1.msra.mxu0 0.0
          %463 = vmatprep.subr.mxu0 0.0
          %464 = vmatpush1.msra.mxu0 0.0
          %465 = vmatprep.subr.mxu0 0.0
          %466 = vmatpush1.msra.mxu0 0.0
          %467 = vmatprep.mubr.f32.mxu0 0.0
          %468 = vmatmul.mubr.f32.gmra.mrb[0].mxu0 %v398
          %v469 = vpop.f32.mrb[0].mxu0
          %v470 = vadd.f32 %v394, %v469
          %v471 = vpop.f32.mrb[0].mxu0
          %472 = vmatprep.mubr.f32.mxu0 0.0
          %473 = vmatmul.mubr.f32.gmra.mrb[0].mxu0 %v401
          %v474 = vpop.f32.mrb[0].mxu0
          %v475 = vadd.f32 %v394, %v474
          %v476 = vpop.f32.mrb[0].mxu0
          %477 = vdwg.mxu0
          %v478 = vld [vmem:[%s5] sm:$0xff]
          %v479 = vld [vmem:[%s5 + $0x8] sm:$0xff]
          %v480 = vld [vmem:[%s6] sm:$0xff]
          %v481 = vld [vmem:[%s6 + $0x8] sm:$0xff]
          %v482 = vmul.f32 %v470, %v478
          %v483 = vmul.f32 %v475, %v479
          %486 = vrot.lane.b32.xlu0 %v480, 8
          %v487 = vpop.permute.xlu0 %486
          %488 = vrot.lane.b32.xlu0 %v481, 8
          %v489 = vpop.permute.xlu0 %488
          %v492 = vmul.f32 %v470, %v487
          %v493 = vmul.f32 %v475, %v489
          %496 = vrot.lane.b32.xlu0 %v492, 120
          %v497 = vpop.permute.xlu0 %496
          %498 = vrot.lane.b32.xlu0 %v493, 120
          %v499 = vpop.permute.xlu0 %498
          %v502 = vsub.f32 %v482, %v497
          %v503 = vsub.f32 %v483, %v499
          %506 = vrot.lane.b32.xlu0 %v478, 8
          %v507 = vpop.permute.xlu0 %506
          %508 = vrot.lane.b32.xlu0 %v479, 8
          %v509 = vpop.permute.xlu0 %508
          %v512 = vmul.f32 %v470, %v507
          %v513 = vmul.f32 %v475, %v509
          %v514 = vmul.f32 %v470, %v480
          %v515 = vmul.f32 %v475, %v481
          %518 = vrot.lane.b32.xlu0 %v514, 8
          %v519 = vpop.permute.xlu0 %518
          %520 = vrot.lane.b32.xlu0 %v515, 8
          %v521 = vpop.permute.xlu0 %520
          %v524 = vadd.f32 %v512, %v519
          %v525 = vadd.f32 %v513, %v521
          %vm526 = vcmask 64512
          %v527 = vsel %vm526, %v502, %v524
          %v528 = vsel %vm526, %v503, %v525
          %v529 = vmul.f32 %v527, 0.25
          %v530 = vmul.f32 %v528, 0.25
          %vm531 = vcmask 130048
          %532 = vst.msk [vmem:[#allocation2] sm:$0xff] %vm531, %v529
          %533 = vst.msk [vmem:[#allocation2 + $0x8] sm:$0xff] %vm531, %v530
          %534 = vrot.lane.b32.xlu0 %v478, 16
          %v535 = vpop.permute.xlu0 %534
          %536 = vrot.lane.b32.xlu0 %v479, 16
          %v537 = vpop.permute.xlu0 %536
          %v540 = vmul.f32 %v470, %v535
          %v541 = vmul.f32 %v475, %v537
          %542 = vrot.lane.b32.xlu0 %v480, 24
          %v543 = vpop.permute.xlu0 %542
          %544 = vrot.lane.b32.xlu0 %v481, 24
          %v545 = vpop.permute.xlu0 %544
          %v548 = vmul.f32 %v470, %v543
          %v549 = vmul.f32 %v475, %v545
          %552 = vrot.lane.b32.xlu0 %v548, 120
          %v553 = vpop.permute.xlu0 %552
          %554 = vrot.lane.b32.xlu0 %v549, 120
          %v555 = vpop.permute.xlu0 %554
          %v558 = vsub.f32 %v540, %v553
          %v559 = vsub.f32 %v541, %v555
          %560 = vrot.lane.b32.xlu0 %v478, 24
          %v561 = vpop.permute.xlu0 %560
          %562 = vrot.lane.b32.xlu0 %v479, 24
          %v563 = vpop.permute.xlu0 %562
          %v566 = vmul.f32 %v470, %v561
          %v567 = vmul.f32 %v475, %v563
          %568 = vrot.lane.b32.xlu0 %v480, 16
          %v569 = vpop.permute.xlu0 %568
          %570 = vrot.lane.b32.xlu0 %v481, 16
          %v571 = vpop.permute.xlu0 %570
          %v574 = vmul.f32 %v470, %v569
          %v575 = vmul.f32 %v475, %v571
          %578 = vrot.lane.b32.xlu0 %v574, 8
          %v579 = vpop.permute.xlu0 %578
          %580 = vrot.lane.b32.xlu0 %v575, 8
          %v581 = vpop.permute.xlu0 %580
          %v584 = vadd.f32 %v566, %v579
          %v585 = vadd.f32 %v567, %v581
          %588 = vrot.lane.b32.xlu0 %v558, 112
          %v589 = vpop.permute.xlu0 %588
          %590 = vrot.lane.b32.xlu0 %v559, 112
          %v591 = vpop.permute.xlu0 %590
          %596 = vrot.lane.b32.xlu0 %v584, 112
          %v597 = vpop.permute.xlu0 %596
          %598 = vrot.lane.b32.xlu0 %v585, 112
          %v599 = vpop.permute.xlu0 %598
          %v602 = vsel %vm526, %v589, %v597
          %v603 = vsel %vm526, %v591, %v599
          %604 = vst.msk [vmem:[#allocation3] sm:$0xff] %vm531, %v602
          %605 = vst.msk [vmem:[#allocation3 + $0x8] sm:$0xff] %vm531, %v603
          %608 = vrot.lane.b32.xlu0 %v470, 96
          %v609 = vpop.permute.xlu0 %608
          %610 = vrot.lane.b32.xlu0 %v475, 96
          %v611 = vpop.permute.xlu0 %610
          %vm614 = vcmask 31744
          %615 = vst.msk [vmem:[#allocation4] sm:$0xff] %vm614, %v609
          %616 = vst.msk [vmem:[#allocation4 + $0x8] sm:$0xff] %vm614, %v611
          %v617 = vld [vmem:[%s3] sm:$0xff]
          %v618 = vld [vmem:[%s3 + $0x8] sm:$0xff]
          %v619 = vld [vmem:[%s3 + $0x10] sm:$0xff]
          %v620 = vld [vmem:[%s3 + $0x18] sm:$0xff]
          %v621 = vld [vmem:[%s4] sm:$0xf]
          %623 = vset.pattern.permute.xlu0 0
          %624 = vperm.xlu0 %623, %v621
          %v625 = vpop.permute.xlu0 %624
          %627 = vxpose.xlu0.b32.start [1/16] %v617, 128
          %628 = vxpose.xlu0.b32.cont [2/16] %v618, 128
          %629 = vxpose.xlu0.b32.cont [3/16] %v619, 128
          %630 = vxpose.xlu0.b32.cont [4/16] %v620, 128
          %631 = vxpose.xlu0.b32.cont [5/16] 0.0, 128
          %632 = vxpose.xlu0.b32.cont [6/16] 0.0, 128
          %633 = vxpose.xlu0.b32.cont [7/16] 0.0, 128
          %634 = vxpose.xlu0.b32.cont [8/16] 0.0, 128
          %635 = vxpose.xlu0.b32.cont [9/16] 0.0, 128
          %636 = vxpose.xlu0.b32.cont [10/16] 0.0, 128
          %637 = vxpose.xlu0.b32.cont [11/16] 0.0, 128
          %638 = vxpose.xlu0.b32.cont [12/16] 0.0, 128
          %639 = vxpose.xlu0.b32.cont [13/16] 0.0, 128
          %640 = vxpose.xlu0.b32.cont [14/16] 0.0, 128
          %641 = vxpose.xlu0.b32.cont [15/16] 0.0, 128
          %642 = vxpose.xlu0.b32.end [16/16] 0.0, 128
          %v643 = vpop.trf.xlu0
          %v644 = vpop.trf.xlu0
          %v645 = vpop.trf.xlu0
          %v646 = vpop.trf.xlu0
          %v647 = vpop.trf.xlu0
          %v648 = vpop.trf.xlu0
          %v649 = vpop.trf.xlu0
          %v650 = vpop.trf.xlu0
          %v651 = vpop.trf.xlu0
          %v652 = vpop.trf.xlu0
          %v653 = vpop.trf.xlu0
          %v654 = vpop.trf.xlu0
          %v655 = vpop.trf.xlu0
          %v656 = vpop.trf.xlu0
          %v657 = vpop.trf.xlu0
          %v658 = vpop.trf.xlu0
          %v660 = vsel %vm396, %v643, 0
          %662 = vmatprep.subr.mxu0 0.0
          %663 = vmatpush1.xpose.msra.mxu0 %v398
          %664 = vmatprep.subr.mxu0 0.0
          %665 = vmatpush1.xpose.msra.mxu0 %v401
          %666 = vmatprep.subr.mxu0 0.0
          %667 = vmatpush1.xpose.msra.mxu0 0.0
          %668 = vmatprep.subr.mxu0 0.0
          %669 = vmatpush1.xpose.msra.mxu0 0.0
          %670 = vmatprep.subr.mxu0 0.0
          %671 = vmatpush1.xpose.msra.mxu0 0.0
          %672 = vmatprep.subr.mxu0 0.0
          %673 = vmatpush1.xpose.msra.mxu0 0.0
          %674 = vmatprep.subr.mxu0 0.0
          %675 = vmatpush1.xpose.msra.mxu0 0.0
          %676 = vmatprep.subr.mxu0 0.0
          %677 = vmatpush1.xpose.msra.mxu0 0.0
          %678 = vmatprep.subr.mxu0 0.0
          %679 = vmatpush1.xpose.msra.mxu0 0.0
          %680 = vmatprep.subr.mxu0 0.0
          %681 = vmatpush1.xpose.msra.mxu0 0.0
          %682 = vmatprep.subr.mxu0 0.0
          %683 = vmatpush1.xpose.msra.mxu0 0.0
          %684 = vmatprep.subr.mxu0 0.0
          %685 = vmatpush1.xpose.msra.mxu0 0.0
          %686 = vmatprep.subr.mxu0 0.0
          %687 = vmatpush1.xpose.msra.mxu0 0.0
          %688 = vmatprep.subr.mxu0 0.0
          %689 = vmatpush1.xpose.msra.mxu0 0.0
          %690 = vmatprep.subr.mxu0 0.0
          %691 = vmatpush1.xpose.msra.mxu0 0.0
          %692 = vmatprep.subr.mxu0 0.0
          %693 = vmatpush1.xpose.msra.mxu0 0.0
          %694 = vmatprep.subr.mxu0 0.0
          %695 = vmatpush1.xpose.msra.mxu0 0.0
          %696 = vmatprep.subr.mxu0 0.0
          %697 = vmatpush1.xpose.msra.mxu0 0.0
          %698 = vmatprep.subr.mxu0 0.0
          %699 = vmatpush1.xpose.msra.mxu0 0.0
          %700 = vmatprep.subr.mxu0 0.0
          %701 = vmatpush1.xpose.msra.mxu0 0.0
          %702 = vmatprep.subr.mxu0 0.0
          %703 = vmatpush1.xpose.msra.mxu0 0.0
          %704 = vmatprep.subr.mxu0 0.0
          %705 = vmatpush1.xpose.msra.mxu0 0.0
          %706 = vmatprep.subr.mxu0 0.0
          %707 = vmatpush1.xpose.msra.mxu0 0.0
          %708 = vmatprep.subr.mxu0 0.0
          %709 = vmatpush1.xpose.msra.mxu0 0.0
          %710 = vmatprep.subr.mxu0 0.0
          %711 = vmatpush1.xpose.msra.mxu0 0.0
          %712 = vmatprep.subr.mxu0 0.0
          %713 = vmatpush1.xpose.msra.mxu0 0.0
          %714 = vmatprep.subr.mxu0 0.0
          %715 = vmatpush1.xpose.msra.mxu0 0.0
          %716 = vmatprep.subr.mxu0 0.0
          %717 = vmatpush1.xpose.msra.mxu0 0.0
          %718 = vmatprep.subr.mxu0 0.0
          %719 = vmatpush1.xpose.msra.mxu0 0.0
          %720 = vmatprep.subr.mxu0 0.0
          %721 = vmatpush1.xpose.msra.mxu0 0.0
          %722 = vmatprep.subr.mxu0 0.0
          %723 = vmatpush1.xpose.msra.mxu0 0.0
          %724 = vmatprep.subr.mxu0 0.0
          %725 = vmatpush1.xpose.msra.mxu0 0.0
          %726 = vmatprep.mubr.f32.mxu0 0.0
          %727 = vmatmul.mubr.f32.gmra.mrb[0].mxu0 %v660
          %v728 = vpop.f32.mrb[0].mxu0
          %v729 = vadd.f32 %v625, %v728
          %v730 = vpop.f32.mrb[0].mxu0
          %731 = vdwg.mxu0
          %vm732 = vcmask 125952
          %733 = vst.msk [vmem:[#allocation5] sm:$0xf] %vm732, %v729
        $region60: #{tpu_custom_call.1} parent=55 // pred_fallthru
          _
        %s734 = smul.u32 %s28, 8
        %s735 = scalar_lea.vmem [#allocation2], %s734
        %v736 = vld [vmem:[%s735] sm:$0xff]
        %v737 = vld [vmem:[#allocation3] sm:$0xff]
        %v738 = vld [vmem:[#allocation3 + $0x8] sm:$0xff]
        %vm739 = vcmask 130048
        %v741 = vsel %vm739, %v736, 0
        %v744 = vsel %vm739, %v737, 0
        %v747 = vsel %vm739, %v738, 0
        %749 = vmatprep.subr.mxu0 0.0
        %750 = vmatpush1.xpose.msra.mxu0 %v744
        %751 = vmatprep.subr.mxu0 0.0
        %752 = vmatpush1.xpose.msra.mxu0 %v747
        %753 = vmatprep.subr.mxu0 0.0
        %754 = vmatpush1.xpose.msra.mxu0 0.0
        %755 = vmatprep.subr.mxu0 0.0
        %756 = vmatpush1.xpose.msra.mxu0 0.0
        %757 = vmatprep.subr.mxu0 0.0
        %758 = vmatpush1.xpose.msra.mxu0 0.0
        %759 = vmatprep.subr.mxu0 0.0
        %760 = vmatpush1.xpose.msra.mxu0 0.0
        %761 = vmatprep.subr.mxu0 0.0
        %762 = vmatpush1.xpose.msra.mxu0 0.0
        %763 = vmatprep.subr.mxu0 0.0
        %764 = vmatpush1.xpose.msra.mxu0 0.0
        %765 = vmatprep.subr.mxu0 0.0
        %766 = vmatpush1.xpose.msra.mxu0 0.0
        %767 = vmatprep.subr.mxu0 0.0
        %768 = vmatpush1.xpose.msra.mxu0 0.0
        %769 = vmatprep.subr.mxu0 0.0
        %770 = vmatpush1.xpose.msra.mxu0 0.0
        %771 = vmatprep.subr.mxu0 0.0
        %772 = vmatpush1.xpose.msra.mxu0 0.0
        %773 = vmatprep.subr.mxu0 0.0
        %774 = vmatpush1.xpose.msra.mxu0 0.0
        %775 = vmatprep.subr.mxu0 0.0
        %776 = vmatpush1.xpose.msra.mxu0 0.0
        %777 = vmatprep.subr.mxu0 0.0
        %778 = vmatpush1.xpose.msra.mxu0 0.0
        %779 = vmatprep.subr.mxu0 0.0
        %780 = vmatpush1.xpose.msra.mxu0 0.0
        %781 = vmatprep.subr.mxu0 0.0
        %782 = vmatpush1.xpose.msra.mxu0 0.0
        %783 = vmatprep.subr.mxu0 0.0
        %784 = vmatpush1.xpose.msra.mxu0 0.0
        %785 = vmatprep.subr.mxu0 0.0
        %786 = vmatpush1.xpose.msra.mxu0 0.0
        %787 = vmatprep.subr.mxu0 0.0
        %788 = vmatpush1.xpose.msra.mxu0 0.0
        %789 = vmatprep.subr.mxu0 0.0
        %790 = vmatpush1.xpose.msra.mxu0 0.0
        %791 = vmatprep.subr.mxu0 0.0
        %792 = vmatpush1.xpose.msra.mxu0 0.0
        %793 = vmatprep.subr.mxu0 0.0
        %794 = vmatpush1.xpose.msra.mxu0 0.0
        %795 = vmatprep.subr.mxu0 0.0
        %796 = vmatpush1.xpose.msra.mxu0 0.0
        %797 = vmatprep.subr.mxu0 0.0
        %798 = vmatpush1.xpose.msra.mxu0 0.0
        %799 = vmatprep.subr.mxu0 0.0
        %800 = vmatpush1.xpose.msra.mxu0 0.0
        %801 = vmatprep.subr.mxu0 0.0
        %802 = vmatpush1.xpose.msra.mxu0 0.0
        %803 = vmatprep.subr.mxu0 0.0
        %804 = vmatpush1.xpose.msra.mxu0 0.0
        %805 = vmatprep.subr.mxu0 0.0
        %806 = vmatpush1.xpose.msra.mxu0 0.0
        %807 = vmatprep.subr.mxu0 0.0
        %808 = vmatpush1.xpose.msra.mxu0 0.0
        %809 = vmatprep.subr.mxu0 0.0
        %810 = vmatpush1.xpose.msra.mxu0 0.0
        %811 = vmatprep.subr.mxu0 0.0
        %812 = vmatpush1.xpose.msra.mxu0 0.0
        %813 = vmatprep.mubr.f32.mxu0 0.0
        %814 = vmatmul.mubr.f32.gmra.mrb[0].mxu0 %v741
        %v815 = vpop.f32.mrb[0].mxu0
        %v816 = vadd.f32 0.0, %v815
        %v817 = vpop.f32.mrb[0].mxu0
        %818 = vdwg.mxu0
        %s819 = scalar_lea.vmem %s375, %s734
        %v820 = vld [vmem:[%s819] sm:$0xff]
        %v821 = vld [vmem:[%s378] sm:$0x1]
        %vm822 = vcmp.gt.f32.partialorder %v820, 0.0
        %vm823 = vcmp.gt.f32.partialorder %v821, 0.0
        %v824 = vsel %vm822, 1, 0
        %825 = vset.pattern.permute.xlu0 0
        %826 = vperm.xlu0 %825, %v824
        %v827 = vpop.permute.xlu0 %826
        %vm828 = vcmp.eq.s32.totalorder %v827, 1
        %v829 = vsel %vm823, 1, 0
        %v830 = vlaneseq
        %v831 = vshrl.u32 %v830, 7
        %v832 = vsub.s32 0, %v831
        %v833 = vrot.slane %v829, %v832
        %vm834 = vcmp.eq.s32.totalorder %v833, 1
        %vm835 = vmand %vm828, %vm834
        %v836 = vlaneseq
        %v837 = vshrl.u32 %v836, 7
        %v838 = vstv %s734
        %v839 = vadd.s32 %v837, %v838
        %v840 = vlaneseq
        %v841 = vand.u32 %v840, 127
        %vm842 = vcmp.gt.s32.totalorder %v839, %v841
        %v843 = vsel %vm842, 1e+12, 0.0
        %v844 = vsel %vm835, %v816, -inf
        %v845 = vsub.f32 %v844, %v843
        %s846 = scalar_lea.vmem [#allocation4], %s734
        %v847 = vld [vmem:[%s846] sm:$0xff]
        %v848 = vld [vmem:[#allocation5] sm:$0xf]
        %850 = vset.pattern.permute.xlu0 0
        %851 = vperm.xlu0 %850, %v847
        %v852 = vpop.permute.xlu0 %851
        %v854 = vadd.f32 %v845, %v852
        %v855 = vlaneseq
        %v856 = vshrl.u32 %v855, 7
        %v857 = vsub.s32 0, %v856
        %v858 = vrot.slane %v848, %v857
        %v859 = vadd.f32 %v854, %v858
        %860 = vst.msk [vmem:[%s365] sm:$0xff] %vm739, %v859
        %861 = vset.pattern.permute.xlu0 1
        %862 = vperm.xlu0 %861, %v847
        %v863 = vpop.permute.xlu0 %862
        %v865 = vadd.f32 %v845, %v863
        %v866 = vlaneseq
        %v867 = vshrl.u32 %v866, 7
        %v868 = vsub.s32 1, %v867
        %v869 = vrot.slane %v848, %v868
        %v870 = vadd.f32 %v865, %v869
        %s871 = scalar_lea.vmem %s365, 8 [#allocation6]
        %872 = vst.msk [vmem:[%s871] sm:$0xff] %vm739, %v870
        %873 = vset.pattern.permute.xlu0 2
        %874 = vperm.xlu0 %873, %v847
        %v875 = vpop.permute.xlu0 %874
        %v877 = vadd.f32 %v845, %v875
        %v878 = vlaneseq
        %v879 = vshrl.u32 %v878, 7
        %v880 = vsub.s32 2, %v879
        %v881 = vrot.slane %v848, %v880
        %v882 = vadd.f32 %v877, %v881
        %s883 = scalar_lea.vmem %s365, 16 [#allocation6]
        %884 = vst.msk [vmem:[%s883] sm:$0xff] %vm739, %v882
        %885 = vset.pattern.permute.xlu0 3
        %886 = vperm.xlu0 %885, %v847
        %v887 = vpop.permute.xlu0 %886
        %v889 = vadd.f32 %v845, %v887
        %v890 = vlaneseq
        %v891 = vshrl.u32 %v890, 7
        %v892 = vsub.s32 3, %v891
        %v893 = vrot.slane %v848, %v892
        %v894 = vadd.f32 %v889, %v893
        %s895 = scalar_lea.vmem %s365, 24 [#allocation6]
        %896 = vst.msk [vmem:[%s895] sm:$0xff] %vm739, %v894
        %s897 = sand.u32 %s249, 1
        %s898 = scalar_lea.sflag [#allocation7], %s897
        %s899 = sand.u32 %s249, 1
        %s900 = smul.addr %s899, 32
        %s901 = scalar_lea.vmem [#allocation6], %s900
        // Predicated region
        $region61: #{tpu_custom_call.1} parent=55 // pred_check
          %p902 = pneg %p259
        $region62: #{tpu_custom_call.1} parent=55 // pred_check_branch
          %904 = sbr.rel (%p902) target = $region64
        $region63: #{tpu_custom_call.1} parent=55 // pred_region
          %s906 = ssub.s32 512, 512
          %907 = vsyncadd %s898, %s906
          %s908 = smul.addr %s27, 8
          %s909 = sadd.s32 %s28, %s908
          %s910 = smul.addr %s909, 128
          %s911 = scalar_lea.hbm %s9, %s910
          %s912 = sshll.u32 %s901, 4
          %s913 = int_to_ptr.vmem [resolvable:$true] %s912
          %918 = dma.vmem_to_hbm [thread:$0]  %s913, 512, %s911, %s898, 128, 256, 8
        $region64: #{tpu_custom_call.1} parent=55 // pred_fallthru
          _
      $region56: #{tpu_custom_call.1} parent=5 // pred_fallthru
        _
      %p919 = scmp.le.s32.totalorder 2, %s18
      // Predicated region
      $region65: #{tpu_custom_call.1} parent=5 // pred_check
        %p920 = pneg %p919
      $region66: #{tpu_custom_call.1} parent=5 // pred_check_branch
        %922 = sbr.rel (%p920) target = $region68
      $region67: #{tpu_custom_call.1} parent=5 // pred_region
        %s923 = ssub.s32 %s18, 2
        // Predicated region
        $region69: #{tpu_custom_call.1} parent=67 // pred_check
          %p924 = pneg %p265
        $region70: #{tpu_custom_call.1} parent=67 // pred_check_branch
          %926 = sbr.rel (%p924) target = $region72
        $region71: #{tpu_custom_call.1} parent=67 // pred_region
          %s927 = sand.u32 %s250, 1
          %s928 = scalar_lea.sflag [#allocation7], %s927
          %s929 = sand.u32 %s250, 1
          %s930 = smul.addr %s929, 32
          %s931 = scalar_lea.vmem [#allocation6], %s930
          %932 = dma.done %s928, 512
        $region72: #{tpu_custom_call.1} parent=67 // pred_fallthru
          _
      $region68: #{tpu_custom_call.1} parent=5 // pred_fallthru
        _
    $region6: #{tpu_custom_call.1} parent=1 // loop_footer
      %s22 = sadd.s32 1, %s18
    $region7: #{tpu_custom_call.1} parent=1 // loop_footer_branch
      %17 = sbr.rel target = $region3
    $region8: #{tpu_custom_call.1} parent=1 // loop_exit
      _
    %933 = vsyncpa [#allocation7], 1
    %s934 = scalar_lea.sflag [#allocation7], 1
    %935 = vsyncpa %s934, 1

</llo_original>
